<compile_context>
chip_gen: v5e
topology: v5e:2x2
jax: 0.10.0
libtpu: 0.0.40
codegen_flags: <defaults>
</compile_context>

<pallas_src>
import jax
import jax.numpy as jnp
from jax.experimental import pallas as pl
from jax.experimental.pallas import tpu as pltpu


def _round_up(x, m):
    return (x + m - 1) // m * m


def _drag_point_kernel(x_ref, w_pre_ref, e_mask_ref, w_a_ref, w_b_ref,
                       affine_ref, w_o1_ref, w_o2_ref, b_o_ref, out_ref):
    D = out_ref.shape[-1]
    TD = w_a_ref.shape[-1]
    T = TD // D
    mm_dtype = w_a_ref.dtype                   # bf16 (or f32) MXU operand dtype

    xr = x_ref[...]                            # (P, 2T) f32, [x0,y0,x1,y1,...]
    nanmask = jnp.isnan(xr)
    xc = jnp.where(nanmask, 0.0, xr)

    # Per-point validity expanded to the lane-packed (P, T*D) layout with one
    # small exact matmul (counts NaN coords per point) — avoids any relayout.
    nan_cnt = jnp.dot(nanmask.astype(jnp.float32), e_mask_ref[...],
                      preferred_element_type=jnp.float32)      # (P, T*D)
    valid_f = jnp.where(nan_cnt > 0.5, 0.0, 1.0)               # {0,1} f32

    # ---- pre-MLP: Linear(2->D, no bias) + folded BN + ReLU, T points packed
    pre = jnp.dot(xc, w_pre_ref[...], preferred_element_type=jnp.float32)
    h = jnp.maximum(pre * affine_ref[0:1, :] + affine_ref[1:2, :], 0.0) * valid_f

    def grouped_max(v):
        """Max over the T per-point channel groups of a (P, T*D) array."""
        m = v[:, 0:D]
        for t in range(1, T):
            m = jnp.maximum(m, v[:, t * D:(t + 1) * D])
        return m                                               # (P, D)

    # ---- max-pool over the T points
    pooled = grouped_max(h)                                    # (P, D)

    # ---- MLP on [point_feat, pooled_feat]: block-diag(w_a) + lane-tiled w_b
    g_lin = (jnp.dot(h.astype(mm_dtype), w_a_ref[...],
                     preferred_element_type=jnp.float32)
             + jnp.dot(pooled.astype(mm_dtype), w_b_ref[...],
                       preferred_element_type=jnp.float32))
    g = jnp.maximum(g_lin * affine_ref[2:3, :] + affine_ref[3:4, :], 0.0) * valid_f

    # ---- second max-pool + out-MLP
    feat = grouped_max(g)                                      # (P, D)
    o = jnp.dot(feat.astype(mm_dtype), w_o1_ref[...],
                preferred_element_type=jnp.float32) + b_o_ref[0:1, :]
    o = jnp.maximum(o, 0.0)
    o = jnp.dot(o.astype(mm_dtype), w_o2_ref[...],
                preferred_element_type=jnp.float32) + b_o_ref[1:2, :]

    # zero polylines with no valid drag point at all
    poly_valid = jnp.max(valid_f, axis=-1, keepdims=True)      # (P, 1)
    out_ref[...] = o * poly_valid


def _pack_pointnet_params(params, T, compute_dtype=jnp.bfloat16):
    """Build lane-packed weights once in the wrapper (pure layout plumbing)."""
    f32 = jnp.float32
    D = params['w_pre'].shape[1]
    w_pre = params['w_pre'].astype(f32)                   # (2, D)
    w_mlp = params['w_mlp'].astype(f32)                   # (2D, D)
    w_a, w_b = w_mlp[:D, :], w_mlp[D:, :]
    eye_t = jnp.eye(T, dtype=f32)

    def tile_vec(v):
        return jnp.tile(jnp.reshape(v, (-1,)), T)

    return {
        # per-point Linear(2->D) replicated along lanes, kept f32 (raw coords)
        'w_pre_big': jnp.kron(eye_t, w_pre),                        # (2T, TD)
        # NaN-count expansion matrix (0/1), exact in f32
        'e_mask':    jnp.kron(eye_t, jnp.ones((2, D), f32)),        # (2T, TD)
        # block-diagonal per-point branch of the (2D->D) MLP
        'w_a_big':   jnp.kron(eye_t, w_a).astype(compute_dtype),    # (TD, TD)
        # pooled branch: (D -> T*D) lane-tiled (pooled feat is compact (P, D))
        'w_b_tiled': jnp.tile(w_b, (1, T)).astype(compute_dtype),   # (D, TD)
        # folded-BN affines, lane-tiled: rows = s_pre, b_pre, s_mlp, b_mlp
        'affine':    jnp.stack([tile_vec(params['s_pre']),
                                tile_vec(params['b_pre']),
                                tile_vec(params['s_mlp']),
                                tile_vec(params['b_mlp'])]).astype(f32),  # (4, TD)
        'w_o1':      params['w_o1'].astype(compute_dtype),          # (D, D)
        'w_o2':      params['w_o2'].astype(compute_dtype),          # (D, D)
        'b_o':       jnp.stack([jnp.reshape(params['b_o1'], (-1,)),
                                jnp.reshape(params['b_o2'], (-1,))]).astype(f32),
    }


def pointnet_polyline_encode(x_flat, params, *, tile_p=512,
                             compute_dtype=jnp.bfloat16):
    """x_flat: [N, T, 2] float32 (N = B*C). Returns [N, D] embeddings."""
    N, T, C = x_flat.shape
    D = params['w_pre'].shape[1]
    pk = _pack_pointnet_params(params, T, compute_dtype)

    # Lane-friendly 2-D input: one polyline per row, all T*(x,y) coords in lanes.
    x2d = jnp.reshape(x_flat, (N, T * C)).astype(jnp.float32)

    # Big polyline tile (amortizes ~0.35us/step pipeline overhead); pad N with
    # all-NaN rows (-> invalid -> zero embedding) so any N works.  For large N
    # the grid has several steps, so v7x's two TensorCores both get work.
    tile = min(_round_up(tile_p, 8), _round_up(max(N, 8), 8))
    n_pad = _round_up(max(N, 8), tile)
    if n_pad != N:
        x2d = jnp.concatenate(
            [x2d, jnp.full((n_pad - N, T * C), jnp.nan, jnp.float32)], axis=0)

    def full_spec(a):
        return pl.BlockSpec(a.shape, lambda i: (0,) * a.ndim)

    out = pl.pallas_call(
        _drag_point_kernel,
        out_shape=jax.ShapeDtypeStruct((n_pad, D), jnp.float32),
        grid=(n_pad // tile,),
        in_specs=[
            pl.BlockSpec((tile, T * C), lambda i: (i, 0)),   # drag points
            full_spec(pk['w_pre_big']),
            full_spec(pk['e_mask']),
            full_spec(pk['w_a_big']),
            full_spec(pk['w_b_tiled']),
            full_spec(pk['affine']),
            full_spec(pk['w_o1']),
            full_spec(pk['w_o2']),
            full_spec(pk['b_o']),
        ],
        out_specs=pl.BlockSpec((tile, D), lambda i: (i, 0)),
        compiler_params=pltpu.CompilerParams(
            dimension_semantics=("parallel",),
            vmem_limit_bytes=32 * 1024 * 1024),
    )(x2d, pk['w_pre_big'], pk['e_mask'], pk['w_a_big'], pk['w_b_tiled'],
      pk['affine'], pk['w_o1'], pk['w_o2'], pk['b_o'])
    return out[:N]


def drag_point_encoder_forward(cond_input, params):
    """Mirrors DragPointEncoder.forward."""
    drag_points = cond_input['input']                   # [B, C, T, 2]
    B, C, T, _ = drag_points.shape
    x_flat = drag_points.reshape(B * C, T, 2)
    emd = pointnet_polyline_encode(x_flat, params)
    D = emd.shape[-1]
    result = {
        'emd': emd.reshape(B, C, D),
        'mask': cond_input['mask'],
        'prompt_idx': cond_input['prompt_idx'],
        'prompt_mask': cond_input['prompt_mask'],
    }
    return {'drag_point': result}


def _fold_bn(gamma, beta, mean, var, eps=1e-5):
    scale = gamma / jnp.sqrt(var + eps)
    bias = beta - mean * scale
    return scale[None, :], bias[None, :]


def init_params(key, D):
    ks = jax.random.split(key, 16)
    p = {}
    p['w_pre'] = jax.random.normal(ks[0], (2, D), jnp.float32) * 0.5
    p['s_pre'], p['b_pre'] = _fold_bn(
        jax.random.uniform(ks[1], (D,), minval=0.5, maxval=1.5),
        jax.random.normal(ks[2], (D,)) * 0.1,
        jax.random.normal(ks[3], (D,)) * 0.1,
        jax.random.uniform(ks[4], (D,), minval=0.5, maxval=1.5))
    p['w_mlp'] = jax.random.normal(ks[5], (2 * D, D), jnp.float32) / jnp.sqrt(2.0 * D)
    p['s_mlp'], p['b_mlp'] = _fold_bn(
        jax.random.uniform(ks[6], (D,), minval=0.5, maxval=1.5),
        jax.random.normal(ks[7], (D,)) * 0.1,
        jax.random.normal(ks[8], (D,)) * 0.1,
        jax.random.uniform(ks[9], (D,), minval=0.5, maxval=1.5))
    p['w_o1'] = jax.random.normal(ks[10], (D, D), jnp.float32) / jnp.sqrt(1.0 * D)
    p['b_o1'] = jax.random.normal(ks[11], (1, D), jnp.float32) * 0.1
    p['w_o2'] = jax.random.normal(ks[12], (D, D), jnp.float32) / jnp.sqrt(1.0 * D)
    p['b_o2'] = jax.random.normal(ks[13], (1, D), jnp.float32) * 0.1
    return p


def ref_forward(x, params):
    """Pure-JAX f32 reference of PointNetPolylineEncoder on [B, C, T, 2]."""
    nanmask = jnp.isnan(x)
    valid = ~jnp.any(nanmask, axis=-1)                          # [B, C, T]
    xc = jnp.where(nanmask, 0.0, x)
    h = jnp.maximum(xc @ params['w_pre'] * params['s_pre'] + params['b_pre'], 0.0)
    h = jnp.where(valid[..., None], h, 0.0)
    pooled = jnp.max(h, axis=-2, keepdims=True)
    hcat = jnp.concatenate([h, jnp.broadcast_to(pooled, h.shape)], axis=-1)
    g = jnp.maximum(hcat @ params['w_mlp'] * params['s_mlp'] + params['b_mlp'], 0.0)
    g = jnp.where(valid[..., None], g, 0.0)
    feat = jnp.max(g, axis=-2)
    o = jnp.maximum(feat @ params['w_o1'] + params['b_o1'], 0.0)
    o = o @ params['w_o2'] + params['b_o2']
    poly_valid = jnp.any(valid, axis=-1)
    return jnp.where(poly_valid[..., None], o, 0.0)


if __name__ == "__main__":
    B, C, T, D = 2, 8, 8, 32
    key = jax.random.PRNGKey(0)
    k_x, k_params = jax.random.split(key)

    x = jax.random.normal(k_x, (B, C, T, 2), jnp.float32)
    # NaNs mark invalid drag points (masked out inside the encoder).
    x = x.at[0, 2, 5:, :].set(jnp.nan)       # partially valid polyline
    x = x.at[1, 3, :, :].set(jnp.nan)        # fully invalid polyline -> zero emd

    cond_input = {
        'input': x,
        'mask': jnp.ones((B, C), dtype=bool),
        'prompt_idx': jnp.zeros((B, C, 1), dtype=jnp.int32),
        'prompt_mask': jnp.ones((B, C), dtype=bool),
    }

    params = init_params(k_params, D)

    out = drag_point_encoder_forward(cond_input, params)
    emd = out['drag_point']['emd']
    jax.block_until_ready(emd)

    ref = ref_forward(x, params)
    assert emd.shape == (B, C, D)
    assert bool(jnp.all(jnp.isfinite(emd)))
    assert bool(jnp.all(emd[1, 3] == 0.0)), "fully-invalid polyline must be zero"
    # bf16 MXU operands -> relaxed tolerance vs the pure-f32 reference.
    max_err = float(jnp.max(jnp.abs(emd - ref)))
    assert bool(jnp.allclose(emd, ref, atol=1e-1, rtol=5e-2)), \
        f"mismatch vs reference (max abs err {max_err:.4f})"

    print("KERNEL_OK")
</pallas_src>

<mosaic_0001>
module attributes {stable_mosaic.version = 11 : i64} {
  func.func @_drag_point_kernel(%arg0: i32, %arg1: memref<16x16xf32, #tpu.memory_space<vmem>>, %arg2: memref<16x256xf32, #tpu.memory_space<vmem>>, %arg3: memref<16x256xf32, #tpu.memory_space<vmem>>, %arg4: memref<256x256xbf16, #tpu.memory_space<vmem>>, %arg5: memref<32x256xbf16, #tpu.memory_space<vmem>>, %arg6: memref<4x256xf32, #tpu.memory_space<vmem>>, %arg7: memref<32x32xbf16, #tpu.memory_space<vmem>>, %arg8: memref<32x32xbf16, #tpu.memory_space<vmem>>, %arg9: memref<2x32xf32, #tpu.memory_space<vmem>>, %arg10: memref<16x32xf32, #tpu.memory_space<vmem>>) attributes {dimension_semantics = [#tpu.dimension_semantics<parallel>], iteration_bounds = array<i64: 1>, scalar_prefetch = 0 : i64, scratch_operands = 0 : i64, tpu.core_type = #tpu.core_type<tc>, window_params = [{transform_indices = @transform_0, window_bounds = array<i64: 16, 16>}, {pipeline_mode = #tpu.pipeline_mode<synchronous>, transform_indices = @transform_1, window_bounds = array<i64: 16, 256>}, {pipeline_mode = #tpu.pipeline_mode<synchronous>, transform_indices = @transform_2, window_bounds = array<i64: 16, 256>}, {pipeline_mode = #tpu.pipeline_mode<synchronous>, transform_indices = @transform_3, window_bounds = array<i64: 256, 256>}, {pipeline_mode = #tpu.pipeline_mode<synchronous>, transform_indices = @transform_4, window_bounds = array<i64: 32, 256>}, {pipeline_mode = #tpu.pipeline_mode<synchronous>, transform_indices = @transform_5, window_bounds = array<i64: 4, 256>}, {pipeline_mode = #tpu.pipeline_mode<synchronous>, transform_indices = @transform_6, window_bounds = array<i64: 32, 32>}, {pipeline_mode = #tpu.pipeline_mode<synchronous>, transform_indices = @transform_7, window_bounds = array<i64: 32, 32>}, {pipeline_mode = #tpu.pipeline_mode<synchronous>, transform_indices = @transform_8, window_bounds = array<i64: 2, 32>}, {transform_indices = @transform_9, window_bounds = array<i64: 16, 32>}]} {
    %c0 = arith.constant 0 : index
    %c0_0 = arith.constant 0 : index
    %0 = vector.load %arg1[%c0, %c0_0] : memref<16x16xf32, #tpu.memory_space<vmem>>, vector<16x16xf32>
    %1 = arith.cmpf one, %0, %0 : vector<16x16xf32>
    %cst = arith.constant 0.000000e+00 : f32
    %2 = vector.broadcast %cst : f32 to vector<16x16xf32>
    %3 = arith.select %1, %2, %0 : vector<16x16xi1>, vector<16x16xf32>
    %4 = arith.extui %1 : vector<16x16xi1> to vector<16x16xi32>
    %5 = arith.sitofp %4 : vector<16x16xi32> to vector<16x16xf32>
    %c0_1 = arith.constant 0 : index
    %c0_2 = arith.constant 0 : index
    %6 = vector.load %arg3[%c0_1, %c0_2] : memref<16x256xf32, #tpu.memory_space<vmem>>, vector<16x256xf32>
    %cst_3 = arith.constant dense<0.000000e+00> : vector<16x256xf32>
    %7 = tpu.matmul %5, %6, %cst_3 {dimension_numbers = #tpu.dot_dimension_numbers<[1], [0], [0], [1], [0, 0, 1, 1], [], []>} : vector<16x16xf32>, vector<16x256xf32>, vector<16x256xf32> -> vector<16x256xf32>
    %cst_4 = arith.constant 5.000000e-01 : f32
    %8 = vector.broadcast %cst_4 : f32 to vector<16x256xf32>
    %9 = arith.cmpf ogt, %7, %8 : vector<16x256xf32>
    %cst_5 = arith.constant 0.000000e+00 : f32
    %cst_6 = arith.constant 1.000000e+00 : f32
    %10 = vector.broadcast %cst_5 : f32 to vector<16x256xf32>
    %11 = vector.broadcast %cst_6 : f32 to vector<16x256xf32>
    %12 = arith.select %9, %10, %11 : vector<16x256xi1>, vector<16x256xf32>
    %c0_7 = arith.constant 0 : index
    %c0_8 = arith.constant 0 : index
    %13 = vector.load %arg2[%c0_7, %c0_8] : memref<16x256xf32, #tpu.memory_space<vmem>>, vector<16x256xf32>
    %cst_9 = arith.constant dense<0.000000e+00> : vector<16x256xf32>
    %14 = tpu.matmul %3, %13, %cst_9 {dimension_numbers = #tpu.dot_dimension_numbers<[1], [0], [0], [1], [0, 0, 1, 1], [], []>} : vector<16x16xf32>, vector<16x256xf32>, vector<16x256xf32> -> vector<16x256xf32>
    %c0_10 = arith.constant 0 : index
    %c0_11 = arith.constant 0 : index
    %15 = vector.load %arg6[%c0_10, %c0_11] : memref<4x256xf32, #tpu.memory_space<vmem>>, vector<1x256xf32>
    %16 = vector.broadcast %15 : vector<1x256xf32> to vector<16x256xf32>
    %17 = arith.mulf %14, %16 : vector<16x256xf32>
    %c1 = arith.constant 1 : index
    %c0_12 = arith.constant 0 : index
    %18 = vector.load %arg6[%c1, %c0_12] : memref<4x256xf32, #tpu.memory_space<vmem>>, vector<1x256xf32>
    %19 = vector.broadcast %18 : vector<1x256xf32> to vector<16x256xf32>
    %20 = arith.addf %17, %19 : vector<16x256xf32>
    %cst_13 = arith.constant 0.000000e+00 : f32
    %21 = vector.broadcast %cst_13 : f32 to vector<16x256xf32>
    %22 = arith.maximumf %20, %21 : vector<16x256xf32>
    %23 = arith.mulf %22, %12 : vector<16x256xf32>
    %24 = vector.extract_strided_slice %23 {offsets = [0, 0], sizes = [16, 32], strides = [1, 1]} : vector<16x256xf32> to vector<16x32xf32>
    %25 = vector.extract_strided_slice %23 {offsets = [0, 32], sizes = [16, 32], strides = [1, 1]} : vector<16x256xf32> to vector<16x32xf32>
    %26 = arith.maximumf %24, %25 : vector<16x32xf32>
    %27 = vector.extract_strided_slice %23 {offsets = [0, 64], sizes = [16, 32], strides = [1, 1]} : vector<16x256xf32> to vector<16x32xf32>
    %28 = arith.maximumf %26, %27 : vector<16x32xf32>
    %29 = vector.extract_strided_slice %23 {offsets = [0, 96], sizes = [16, 32], strides = [1, 1]} : vector<16x256xf32> to vector<16x32xf32>
    %30 = arith.maximumf %28, %29 : vector<16x32xf32>
    %31 = vector.extract_strided_slice %23 {offsets = [0, 128], sizes = [16, 32], strides = [1, 1]} : vector<16x256xf32> to vector<16x32xf32>
    %32 = arith.maximumf %30, %31 : vector<16x32xf32>
    %33 = vector.extract_strided_slice %23 {offsets = [0, 160], sizes = [16, 32], strides = [1, 1]} : vector<16x256xf32> to vector<16x32xf32>
    %34 = arith.maximumf %32, %33 : vector<16x32xf32>
    %35 = vector.extract_strided_slice %23 {offsets = [0, 192], sizes = [16, 32], strides = [1, 1]} : vector<16x256xf32> to vector<16x32xf32>
    %36 = arith.maximumf %34, %35 : vector<16x32xf32>
    %37 = vector.extract_strided_slice %23 {offsets = [0, 224], sizes = [16, 32], strides = [1, 1]} : vector<16x256xf32> to vector<16x32xf32>
    %38 = arith.maximumf %36, %37 : vector<16x32xf32>
    %39 = arith.truncf %23 : vector<16x256xf32> to vector<16x256xbf16>
    %c0_14 = arith.constant 0 : index
    %c0_15 = arith.constant 0 : index
    %40 = vector.load %arg4[%c0_14, %c0_15] : memref<256x256xbf16, #tpu.memory_space<vmem>>, vector<256x256xbf16>
    %cst_16 = arith.constant dense<0.000000e+00> : vector<16x256xf32>
    %41 = tpu.matmul %39, %40, %cst_16 {dimension_numbers = #tpu.dot_dimension_numbers<[1], [0], [0], [1], [0, 0, 1, 1], [], []>} : vector<16x256xbf16>, vector<256x256xbf16>, vector<16x256xf32> -> vector<16x256xf32>
    %42 = arith.truncf %38 : vector<16x32xf32> to vector<16x32xbf16>
    %c0_17 = arith.constant 0 : index
    %c0_18 = arith.constant 0 : index
    %43 = vector.load %arg5[%c0_17, %c0_18] : memref<32x256xbf16, #tpu.memory_space<vmem>>, vector<32x256xbf16>
    %cst_19 = arith.constant dense<0.000000e+00> : vector<16x256xf32>
    %44 = tpu.matmul %42, %43, %cst_19 {dimension_numbers = #tpu.dot_dimension_numbers<[1], [0], [0], [1], [0, 0, 1, 1], [], []>} : vector<16x32xbf16>, vector<32x256xbf16>, vector<16x256xf32> -> vector<16x256xf32>
    %45 = arith.addf %41, %44 : vector<16x256xf32>
    %c2 = arith.constant 2 : index
    %c0_20 = arith.constant 0 : index
    %46 = vector.load %arg6[%c2, %c0_20] : memref<4x256xf32, #tpu.memory_space<vmem>>, vector<1x256xf32>
    %47 = vector.broadcast %46 : vector<1x256xf32> to vector<16x256xf32>
    %48 = arith.mulf %45, %47 : vector<16x256xf32>
    %c3 = arith.constant 3 : index
    %c0_21 = arith.constant 0 : index
    %49 = vector.load %arg6[%c3, %c0_21] : memref<4x256xf32, #tpu.memory_space<vmem>>, vector<1x256xf32>
    %50 = vector.broadcast %49 : vector<1x256xf32> to vector<16x256xf32>
    %51 = arith.addf %48, %50 : vector<16x256xf32>
    %cst_22 = arith.constant 0.000000e+00 : f32
    %52 = vector.broadcast %cst_22 : f32 to vector<16x256xf32>
    %53 = arith.maximumf %51, %52 : vector<16x256xf32>
    %54 = arith.mulf %53, %12 : vector<16x256xf32>
    %55 = vector.extract_strided_slice %54 {offsets = [0, 0], sizes = [16, 32], strides = [1, 1]} : vector<16x256xf32> to vector<16x32xf32>
    %56 = vector.extract_strided_slice %54 {offsets = [0, 32], sizes = [16, 32], strides = [1, 1]} : vector<16x256xf32> to vector<16x32xf32>
    %57 = arith.maximumf %55, %56 : vector<16x32xf32>
    %58 = vector.extract_strided_slice %54 {offsets = [0, 64], sizes = [16, 32], strides = [1, 1]} : vector<16x256xf32> to vector<16x32xf32>
    %59 = arith.maximumf %57, %58 : vector<16x32xf32>
    %60 = vector.extract_strided_slice %54 {offsets = [0, 96], sizes = [16, 32], strides = [1, 1]} : vector<16x256xf32> to vector<16x32xf32>
    %61 = arith.maximumf %59, %60 : vector<16x32xf32>
    %62 = vector.extract_strided_slice %54 {offsets = [0, 128], sizes = [16, 32], strides = [1, 1]} : vector<16x256xf32> to vector<16x32xf32>
    %63 = arith.maximumf %61, %62 : vector<16x32xf32>
    %64 = vector.extract_strided_slice %54 {offsets = [0, 160], sizes = [16, 32], strides = [1, 1]} : vector<16x256xf32> to vector<16x32xf32>
    %65 = arith.maximumf %63, %64 : vector<16x32xf32>
    %66 = vector.extract_strided_slice %54 {offsets = [0, 192], sizes = [16, 32], strides = [1, 1]} : vector<16x256xf32> to vector<16x32xf32>
    %67 = arith.maximumf %65, %66 : vector<16x32xf32>
    %68 = vector.extract_strided_slice %54 {offsets = [0, 224], sizes = [16, 32], strides = [1, 1]} : vector<16x256xf32> to vector<16x32xf32>
    %69 = arith.maximumf %67, %68 : vector<16x32xf32>
    %70 = arith.truncf %69 : vector<16x32xf32> to vector<16x32xbf16>
    %c0_23 = arith.constant 0 : index
    %c0_24 = arith.constant 0 : index
    %71 = vector.load %arg7[%c0_23, %c0_24] : memref<32x32xbf16, #tpu.memory_space<vmem>>, vector<32x32xbf16>
    %cst_25 = arith.constant dense<0.000000e+00> : vector<16x32xf32>
    %72 = tpu.matmul %70, %71, %cst_25 {dimension_numbers = #tpu.dot_dimension_numbers<[1], [0], [0], [1], [0, 0, 1, 1], [], []>} : vector<16x32xbf16>, vector<32x32xbf16>, vector<16x32xf32> -> vector<16x32xf32>
    %c0_26 = arith.constant 0 : index
    %c0_27 = arith.constant 0 : index
    %73 = vector.load %arg9[%c0_26, %c0_27] : memref<2x32xf32, #tpu.memory_space<vmem>>, vector<1x32xf32>
    %74 = vector.broadcast %73 : vector<1x32xf32> to vector<16x32xf32>
    %75 = arith.addf %72, %74 : vector<16x32xf32>
    %cst_28 = arith.constant 0.000000e+00 : f32
    %76 = vector.broadcast %cst_28 : f32 to vector<16x32xf32>
    %77 = arith.maximumf %75, %76 : vector<16x32xf32>
    %78 = arith.truncf %77 : vector<16x32xf32> to vector<16x32xbf16>
    %c0_29 = arith.constant 0 : index
    %c0_30 = arith.constant 0 : index
    %79 = vector.load %arg8[%c0_29, %c0_30] : memref<32x32xbf16, #tpu.memory_space<vmem>>, vector<32x32xbf16>
    %cst_31 = arith.constant dense<0.000000e+00> : vector<16x32xf32>
    %80 = tpu.matmul %78, %79, %cst_31 {dimension_numbers = #tpu.dot_dimension_numbers<[1], [0], [0], [1], [0, 0, 1, 1], [], []>} : vector<16x32xbf16>, vector<32x32xbf16>, vector<16x32xf32> -> vector<16x32xf32>
    %c1_32 = arith.constant 1 : index
    %c0_33 = arith.constant 0 : index
    %81 = vector.load %arg9[%c1_32, %c0_33] : memref<2x32xf32, #tpu.memory_space<vmem>>, vector<1x32xf32>
    %82 = vector.broadcast %81 : vector<1x32xf32> to vector<16x32xf32>
    %83 = arith.addf %80, %82 : vector<16x32xf32>
    %cst_34 = arith.constant dense<0xFF800000> : vector<16xf32>
    %84 = vector.multi_reduction <maximumf>, %12, %cst_34 [1] : vector<16x256xf32> to vector<16xf32>
    %85 = vector.shape_cast %84 : vector<16xf32> to vector<16x1xf32>
    %86 = vector.broadcast %85 : vector<16x1xf32> to vector<16x32xf32>
    %87 = arith.mulf %83, %86 : vector<16x32xf32>
    %c0_35 = arith.constant 0 : index
    %c0_36 = arith.constant 0 : index
    %88 = vector.load %arg10[%c0_35, %c0_36] : memref<16x32xf32, #tpu.memory_space<vmem>>, vector<16x32xf32>
    tpu.vector_store %arg10[%c0_35, %c0_36], %87 {strides = array<i32>} : memref<16x32xf32, #tpu.memory_space<vmem>>, vector<16x32xf32>,
    return
  }
  func.func @transform_0(%arg0: i32) -> (i32, i32) {
    %c0_i32 = arith.constant 0 : i32
    %c0_i32_0 = arith.constant 0 : i32
    return %arg0, %c0_i32 : i32, i32
  }
  func.func @transform_1(%arg0: i32) -> (i32, i32) {
    %c0_i32 = arith.constant 0 : i32
    %c0_i32_0 = arith.constant 0 : i32
    %c0_i32_1 = arith.constant 0 : i32
    return %c0_i32, %c0_i32_0 : i32, i32
  }
  func.func @transform_2(%arg0: i32) -> (i32, i32) {
    %c0_i32 = arith.constant 0 : i32
    %c0_i32_0 = arith.constant 0 : i32
    %c0_i32_1 = arith.constant 0 : i32
    return %c0_i32, %c0_i32_0 : i32, i32
  }
  func.func @transform_3(%arg0: i32) -> (i32, i32) {
    %c0_i32 = arith.constant 0 : i32
    %c0_i32_0 = arith.constant 0 : i32
    %c0_i32_1 = arith.constant 0 : i32
    return %c0_i32, %c0_i32_0 : i32, i32
  }
  func.func @transform_4(%arg0: i32) -> (i32, i32) {
    %c0_i32 = arith.constant 0 : i32
    %c0_i32_0 = arith.constant 0 : i32
    %c0_i32_1 = arith.constant 0 : i32
    return %c0_i32, %c0_i32_0 : i32, i32
  }
  func.func @transform_5(%arg0: i32) -> (i32, i32) {
    %c0_i32 = arith.constant 0 : i32
    %c0_i32_0 = arith.constant 0 : i32
    %c0_i32_1 = arith.constant 0 : i32
    return %c0_i32, %c0_i32_0 : i32, i32
  }
  func.func @transform_6(%arg0: i32) -> (i32, i32) {
    %c0_i32 = arith.constant 0 : i32
    %c0_i32_0 = arith.constant 0 : i32
    %c0_i32_1 = arith.constant 0 : i32
    return %c0_i32, %c0_i32_0 : i32, i32
  }
  func.func @transform_7(%arg0: i32) -> (i32, i32) {
    %c0_i32 = arith.constant 0 : i32
    %c0_i32_0 = arith.constant 0 : i32
    %c0_i32_1 = arith.constant 0 : i32
    return %c0_i32, %c0_i32_0 : i32, i32
  }
  func.func @transform_8(%arg0: i32) -> (i32, i32) {
    %c0_i32 = arith.constant 0 : i32
    %c0_i32_0 = arith.constant 0 : i32
    %c0_i32_1 = arith.constant 0 : i32
    return %c0_i32, %c0_i32_0 : i32, i32
  }
  func.func @transform_9(%arg0: i32) -> (i32, i32) {
    %c0_i32 = arith.constant 0 : i32
    %c0_i32_0 = arith.constant 0 : i32
    return %arg0, %c0_i32 : i32, i32
  }
}

</mosaic_0001>

<llo_original>
// kernel: tpu_custom_call.1
$region0: #{tpu_custom_call.1}
  #allocation0 [shape = 'u32[]', space=smem, size = 0x4, offset = 0x4, fixed_abs, tag = 'smem constant byte address 0x4 - core index']
  #allocation1 [shape = 'u32[72,128]{1,0:T(1,128)}', space=vmem, size = 0x9000, scoped, tag = 'internal scratch']
  %s0 = inlined_call_operand.hbm [shape: f32[16,16], index: 0, kind: input, shape index: {}]
  %s1 = inlined_call_operand.hbm [shape: f32[16,256], index: 1, kind: input, shape index: {}]
  %s2 = inlined_call_operand.hbm [shape: f32[16,256], index: 2, kind: input, shape index: {}]
  %s3 = inlined_call_operand.hbm [shape: bf16[256,256], index: 3, kind: input, shape index: {}]
  %s4 = inlined_call_operand.hbm [shape: bf16[32,256], index: 4, kind: input, shape index: {}]
  %s5 = inlined_call_operand.hbm [shape: f32[4,256], index: 5, kind: input, shape index: {}]
  %s6 = inlined_call_operand.hbm [shape: bf16[32,32], index: 6, kind: input, shape index: {}]
  %s7 = inlined_call_operand.hbm [shape: bf16[32,32], index: 7, kind: input, shape index: {}]
  %s8 = inlined_call_operand.vmem [shape: f32[2,32], index: 8, kind: input, shape index: {}]
  %s9 = inlined_call_operand.hbm [shape: f32[16,32], index: 9, kind: output, shape index: {}]
  %s10 = sld [smem:[#allocation0]]
  $region78: #{tpu_custom_call.1} parent=0
    _
  %s12 = ssub.s32 1, %s10
  %s13 = scalar_select 0, %s12, %s10
  $region1: #{tpu_custom_call.1} parent=0
    #allocation2 [shape = 'u8[8192]{0}', space=vmem, size = 0x2000, scoped, tag = 'input window, operand 0, single buffered']
    #allocation3 [shape = 's32[1]{0}', space=sflag, size = 0x4, scoped, tag = 'scoped memory for tpu_custom_call.1']
    #allocation4 [shape = 's32[1]{0}', space=sflag, size = 0x4, scoped, tag = 'scoped memory for tpu_custom_call.1']
    #allocation5 [shape = 'u8[16384]{0}', space=vmem, size = 0x4000, scoped, tag = 'input window, operand 1, single buffered']
    #allocation6 [shape = 's32[1]{0}', space=sflag, size = 0x4, scoped, tag = 'scoped memory for tpu_custom_call.1']
    #allocation7 [shape = 'u8[16384]{0}', space=vmem, size = 0x4000, scoped, tag = 'input window, operand 2, single buffered']
    #allocation8 [shape = 'u8[131072]{0}', space=vmem, size = 0x20000, scoped, tag = 'input window, operand 3, single buffered']
    #allocation9 [shape = 's32[1]{0}', space=sflag, size = 0x4, scoped, tag = 'scoped memory for tpu_custom_call.1']
    #allocation10 [shape = 'u8[16384]{0}', space=vmem, size = 0x4000, scoped, tag = 'input window, operand 4, single buffered']
    #allocation11 [shape = 'u8[4096]{0}', space=vmem, size = 0x1000, scoped, tag = 'input window, operand 5, single buffered']
    #allocation12 [shape = 's32[1]{0}', space=sflag, size = 0x4, scoped, tag = 'scoped memory for tpu_custom_call.1']
    #allocation13 [shape = 'u8[8192]{0}', space=vmem, size = 0x2000, scoped, tag = 'input window, operand 6, single buffered']
    #allocation14 [shape = 'u8[8192]{0}', space=vmem, size = 0x2000, scoped, tag = 'input window, operand 7, single buffered']
    #allocation15 [shape = 's32[1]{0}', space=sflag, size = 0x4, scoped, tag = 'scoped memory for tpu_custom_call.1']
    #allocation16 [shape = 'u8[8192]{0}', space=vmem, size = 0x2000, scoped, tag = 'output window, operand 0, single buffered']
    %14 = vsyncpa [#allocation3], 0
    %15 = vsyncpa [#allocation6], 0
    %16 = vsyncpa [#allocation9], 0
    %17 = vsyncpa [#allocation12], 0
    %18 = vsyncpa [#allocation15], 0
    %19 = vsyncpa [#allocation4], 0
    // Predicated region
    $region2: #{tpu_custom_call.1} parent=1 // pred_check
      _
    $region3: #{tpu_custom_call.1} parent=1 // pred_check_branch
      %21 = sbr.rel (0) target = $region5
    $region4: #{tpu_custom_call.1} parent=1 // pred_region
      %23 = vsyncadd [#allocation3], 0
      %s24 = sshll.u32 %s0, 4
      %s25 = int_to_ptr.hbm [resolvable:$true] %s24
      %s26 = sshll.u32 [#allocation2], 4
      %s27 = int_to_ptr.vmem [resolvable:$true] %s26
      %32 = dma.hbm_to_vmem [thread:$0]  %s25, 256, %s27, [#allocation3], 128, 128, 8
    $region5: #{tpu_custom_call.1} parent=1 // pred_fallthru
      _
    // Predicated region
    $region6: #{tpu_custom_call.1} parent=1 // pred_check
      _
    $region7: #{tpu_custom_call.1} parent=1 // pred_check_branch
      %34 = sbr.rel (0) target = $region9
    $region8: #{tpu_custom_call.1} parent=1 // pred_region
      %36 = vsyncadd [#allocation6], 0
      %s37 = sshll.u32 %s1, 4
      %s38 = int_to_ptr.hbm [resolvable:$true] %s37
      %s39 = sshll.u32 [#allocation5], 4
      %s40 = int_to_ptr.vmem [resolvable:$true] %s39
      %45 = dma.hbm_to_vmem [thread:$0]  %s38, 512, %s40, [#allocation6], 256, 256, 16
    $region9: #{tpu_custom_call.1} parent=1 // pred_fallthru
      _
    // Predicated region
    $region10: #{tpu_custom_call.1} parent=1 // pred_check
      _
    $region11: #{tpu_custom_call.1} parent=1 // pred_check_branch
      %47 = sbr.rel (0) target = $region13
    $region12: #{tpu_custom_call.1} parent=1 // pred_region
      %49 = vsyncadd [#allocation6], 0
      %s50 = sshll.u32 %s2, 4
      %s51 = int_to_ptr.hbm [resolvable:$true] %s50
      %s52 = sshll.u32 [#allocation7], 4
      %s53 = int_to_ptr.vmem [resolvable:$true] %s52
      %58 = dma.hbm_to_vmem [thread:$0]  %s51, 512, %s53, [#allocation6], 256, 256, 16
    $region13: #{tpu_custom_call.1} parent=1 // pred_fallthru
      _
    // Predicated region
    $region14: #{tpu_custom_call.1} parent=1 // pred_check
      _
    $region15: #{tpu_custom_call.1} parent=1 // pred_check_branch
      %60 = sbr.rel (0) target = $region17
    $region16: #{tpu_custom_call.1} parent=1 // pred_region
      %62 = vsyncadd [#allocation9], 0
      %s63 = sshll.u32 %s3, 4
      %s64 = int_to_ptr.hbm [resolvable:$true] %s63
      %s65 = sshll.u32 [#allocation8], 4
      %s66 = int_to_ptr.vmem [resolvable:$true] %s65
      %71 = dma.hbm_to_vmem [thread:$0]  %s64, 4096, %s66, [#allocation9], 128, 128, 8
    $region17: #{tpu_custom_call.1} parent=1 // pred_fallthru
      _
    // Predicated region
    $region18: #{tpu_custom_call.1} parent=1 // pred_check
      _
    $region19: #{tpu_custom_call.1} parent=1 // pred_check_branch
      %73 = sbr.rel (0) target = $region21
    $region20: #{tpu_custom_call.1} parent=1 // pred_region
      %75 = vsyncadd [#allocation9], 0
      %s76 = sshll.u32 %s4, 4
      %s77 = int_to_ptr.hbm [resolvable:$true] %s76
      %s78 = sshll.u32 [#allocation10], 4
      %s79 = int_to_ptr.vmem [resolvable:$true] %s78
      %84 = dma.hbm_to_vmem [thread:$0]  %s77, 512, %s79, [#allocation9], 128, 128, 8
    $region21: #{tpu_custom_call.1} parent=1 // pred_fallthru
      _
    // Predicated region
    $region22: #{tpu_custom_call.1} parent=1 // pred_check
      _
    $region23: #{tpu_custom_call.1} parent=1 // pred_check_branch
      %86 = sbr.rel (0) target = $region25
    $region24: #{tpu_custom_call.1} parent=1 // pred_region
      %88 = vsyncadd [#allocation12], 0
      %s90 = sshll.u32 %s5, 4
      %s91 = int_to_ptr.hbm [resolvable:$true] %s90
      %s92 = sshll.u32 [#allocation11], 4
      %s93 = int_to_ptr.vmem [resolvable:$true] %s92
      %95 = dma.hbm_to_vmem [thread:$0]  %s91, 128, %s93, [#allocation12]
    $region25: #{tpu_custom_call.1} parent=1 // pred_fallthru
      _
    // Predicated region
    $region26: #{tpu_custom_call.1} parent=1 // pred_check
      _
    $region27: #{tpu_custom_call.1} parent=1 // pred_check_branch
      %97 = sbr.rel (0) target = $region29
    $region28: #{tpu_custom_call.1} parent=1 // pred_region
      %99 = vsyncadd [#allocation12], 0
      %s100 = sshll.u32 %s6, 4
      %s101 = int_to_ptr.hbm [resolvable:$true] %s100
      %s102 = sshll.u32 [#allocation13], 4
      %s103 = int_to_ptr.vmem [resolvable:$true] %s102
      %108 = dma.hbm_to_vmem [thread:$0]  %s101, 256, %s103, [#allocation12], 64, 64, 4
    $region29: #{tpu_custom_call.1} parent=1 // pred_fallthru
      _
    // Predicated region
    $region30: #{tpu_custom_call.1} parent=1 // pred_check
      _
    $region31: #{tpu_custom_call.1} parent=1 // pred_check_branch
      %110 = sbr.rel (0) target = $region33
    $region32: #{tpu_custom_call.1} parent=1 // pred_region
      %112 = vsyncadd [#allocation15], 0
      %s113 = sshll.u32 %s7, 4
      %s114 = int_to_ptr.hbm [resolvable:$true] %s113
      %s115 = sshll.u32 [#allocation14], 4
      %s116 = int_to_ptr.vmem [resolvable:$true] %s115
      %121 = dma.hbm_to_vmem [thread:$0]  %s114, 256, %s116, [#allocation15], 64, 64, 4
    $region33: #{tpu_custom_call.1} parent=1 // pred_fallthru
      _
    // Predicated region
    $region34: #{tpu_custom_call.1} parent=1 // pred_check
      _
    $region35: #{tpu_custom_call.1} parent=1 // pred_check_branch
      %123 = sbr.rel (0) target = $region37
    $region36: #{tpu_custom_call.1} parent=1 // pred_region
      _
    $region37: #{tpu_custom_call.1} parent=1 // pred_fallthru
      _
    // Predicated region
    $region38: #{tpu_custom_call.1} parent=1 // pred_check
      _
    $region39: #{tpu_custom_call.1} parent=1 // pred_check_branch
      %125 = sbr.rel (0) target = $region41
    $region40: #{tpu_custom_call.1} parent=1 // pred_region
      %127 = dma.done [#allocation3], 256
    $region41: #{tpu_custom_call.1} parent=1 // pred_fallthru
      _
    // Predicated region
    $region42: #{tpu_custom_call.1} parent=1 // pred_check
      _
    $region43: #{tpu_custom_call.1} parent=1 // pred_check_branch
      %129 = sbr.rel (0) target = $region45
    $region44: #{tpu_custom_call.1} parent=1 // pred_region
      %131 = dma.done [#allocation6], 512
    $region45: #{tpu_custom_call.1} parent=1 // pred_fallthru
      _
    // Predicated region
    $region46: #{tpu_custom_call.1} parent=1 // pred_check
      _
    $region47: #{tpu_custom_call.1} parent=1 // pred_check_branch
      %133 = sbr.rel (0) target = $region49
    $region48: #{tpu_custom_call.1} parent=1 // pred_region
      %135 = dma.done [#allocation6], 512
    $region49: #{tpu_custom_call.1} parent=1 // pred_fallthru
      _
    // Predicated region
    $region50: #{tpu_custom_call.1} parent=1 // pred_check
      _
    $region51: #{tpu_custom_call.1} parent=1 // pred_check_branch
      %137 = sbr.rel (0) target = $region53
    $region52: #{tpu_custom_call.1} parent=1 // pred_region
      %139 = dma.done [#allocation9], 4096
    $region53: #{tpu_custom_call.1} parent=1 // pred_fallthru
      _
    // Predicated region
    $region54: #{tpu_custom_call.1} parent=1 // pred_check
      _
    $region55: #{tpu_custom_call.1} parent=1 // pred_check_branch
      %141 = sbr.rel (0) target = $region57
    $region56: #{tpu_custom_call.1} parent=1 // pred_region
      %143 = dma.done [#allocation9], 512
    $region57: #{tpu_custom_call.1} parent=1 // pred_fallthru
      _
    // Predicated region
    $region58: #{tpu_custom_call.1} parent=1 // pred_check
      _
    $region59: #{tpu_custom_call.1} parent=1 // pred_check_branch
      %145 = sbr.rel (0) target = $region61
    $region60: #{tpu_custom_call.1} parent=1 // pred_region
      %147 = dma.done [#allocation12], 128
    $region61: #{tpu_custom_call.1} parent=1 // pred_fallthru
      _
    // Predicated region
    $region62: #{tpu_custom_call.1} parent=1 // pred_check
      _
    $region63: #{tpu_custom_call.1} parent=1 // pred_check_branch
      %149 = sbr.rel (0) target = $region65
    $region64: #{tpu_custom_call.1} parent=1 // pred_region
      %151 = dma.done [#allocation12], 256
    $region65: #{tpu_custom_call.1} parent=1 // pred_fallthru
      _
    // Predicated region
    $region66: #{tpu_custom_call.1} parent=1 // pred_check
      _
    $region67: #{tpu_custom_call.1} parent=1 // pred_check_branch
      %153 = sbr.rel (0) target = $region69
    $region68: #{tpu_custom_call.1} parent=1 // pred_region
      %155 = dma.done [#allocation15], 256
    $region69: #{tpu_custom_call.1} parent=1 // pred_fallthru
      _
    %v157 = vld [vmem:[#allocation2] sm:$0xff]
    %v158 = vld [vmem:[#allocation2 + $0x8] sm:$0xff]
    %vm159 = vcmp.ne.f32.partialorder %v157, %v157
    %vm160 = vcmp.ne.f32.partialorder %v158, %v158
    %v161 = vsel %vm159, 0.0, %v157
    %v162 = vsel %vm160, 0.0, %v158
    %v163 = vsel %vm159, 1, 0
    %v164 = vsel %vm160, 1, 0
    %v165 = vcvt.s32.f32 %v163
    %v166 = vcvt.s32.f32 %v164
    %v167 = vld [vmem:[#allocation7] sm:$0xff]
    %v168 = vld [vmem:[#allocation7 + $0x8] sm:$0xff]
    %v169 = vld [vmem:[#allocation7 + $0x10] sm:$0xff]
    %v170 = vld [vmem:[#allocation7 + $0x18] sm:$0xff]
    %vm171 = vcmask 130048
    %v173 = vsel %vm171, %v165, 0
    %v176 = vsel %vm171, %v166, 0
    %178 = vmatpush.msra.mxu0 0.0
    %179 = vmatpush.msra.mxu0 0.0
    %180 = vmatpush.msra.mxu0 0.0
    %181 = vmatpush.msra.mxu0 0.0
    %182 = vmatpush.msra.mxu0 0.0
    %183 = vmatpush.msra.mxu0 0.0
    %184 = vmatpush.msra.mxu0 0.0
    %185 = vmatpush.msra.mxu0 0.0
    %186 = vmatpush.msra.mxu0 0.0
    %187 = vmatpush.msra.mxu0 0.0
    %188 = vmatpush.msra.mxu0 0.0
    %189 = vmatpush.msra.mxu0 0.0
    %190 = vmatpush.msra.mxu0 0.0
    %191 = vmatpush.msra.mxu0 0.0
    %192 = vmatpush.msra.mxu0 %v169
    %193 = vmatpush.msra.mxu0 %v167
    %194 = vmatmul.f32.gmra.mxu0 %v173
    %v195 = vpop.f32.mrf.mxu0
    %v196 = vadd.f32 0.0, %v195
    %197 = vmatmul.f32.gmra.mxu0 %v176
    %v198 = vpop.f32.mrf.mxu0
    %v199 = vadd.f32 0.0, %v198
    %200 = vdwg.mxu0
    %201 = vmatpush.msra.mxu0 0.0
    %202 = vmatpush.msra.mxu0 0.0
    %203 = vmatpush.msra.mxu0 0.0
    %204 = vmatpush.msra.mxu0 0.0
    %205 = vmatpush.msra.mxu0 0.0
    %206 = vmatpush.msra.mxu0 0.0
    %207 = vmatpush.msra.mxu0 0.0
    %208 = vmatpush.msra.mxu0 0.0
    %209 = vmatpush.msra.mxu0 0.0
    %210 = vmatpush.msra.mxu0 0.0
    %211 = vmatpush.msra.mxu0 0.0
    %212 = vmatpush.msra.mxu0 0.0
    %213 = vmatpush.msra.mxu0 0.0
    %214 = vmatpush.msra.mxu0 0.0
    %215 = vmatpush.msra.mxu0 %v170
    %216 = vmatpush.msra.mxu0 %v168
    %217 = vmatmul.f32.gmra.mxu0 %v173
    %v218 = vpop.f32.mrf.mxu0
    %v219 = vadd.f32 0.0, %v218
    %220 = vmatmul.f32.gmra.mxu0 %v176
    %v221 = vpop.f32.mrf.mxu0
    %v222 = vadd.f32 0.0, %v221
    %223 = vdwg.mxu0
    %vm224 = vcmp.gt.f32.partialorder %v196, 0.5
    %vm225 = vcmp.gt.f32.partialorder %v219, 0.5
    %vm226 = vcmp.gt.f32.partialorder %v199, 0.5
    %vm227 = vcmp.gt.f32.partialorder %v222, 0.5
    %v228 = vsel %vm224, 0.0, 1.0
    %v229 = vsel %vm225, 0.0, 1.0
    %v230 = vsel %vm226, 0.0, 1.0
    %v231 = vsel %vm227, 0.0, 1.0
    %v232 = vld [vmem:[#allocation5] sm:$0xff]
    %v233 = vld [vmem:[#allocation5 + $0x8] sm:$0xff]
    %v234 = vld [vmem:[#allocation5 + $0x10] sm:$0xff]
    %v235 = vld [vmem:[#allocation5 + $0x18] sm:$0xff]
    %v237 = vsel %vm171, %v161, 0
    %v240 = vsel %vm171, %v162, 0
    %242 = vmatpush.msra.mxu0 0.0
    %243 = vmatpush.msra.mxu0 0.0
    %244 = vmatpush.msra.mxu0 0.0
    %245 = vmatpush.msra.mxu0 0.0
    %246 = vmatpush.msra.mxu0 0.0
    %247 = vmatpush.msra.mxu0 0.0
    %248 = vmatpush.msra.mxu0 0.0
    %249 = vmatpush.msra.mxu0 0.0
    %250 = vmatpush.msra.mxu0 0.0
    %251 = vmatpush.msra.mxu0 0.0
    %252 = vmatpush.msra.mxu0 0.0
    %253 = vmatpush.msra.mxu0 0.0
    %254 = vmatpush.msra.mxu0 0.0
    %255 = vmatpush.msra.mxu0 0.0
    %256 = vmatpush.msra.mxu0 %v234
    %257 = vmatpush.msra.mxu0 %v232
    %258 = vmatmul.f32.gmra.mxu0 %v237
    %v259 = vpop.f32.mrf.mxu0
    %v260 = vadd.f32 0.0, %v259
    %261 = vmatmul.f32.gmra.mxu0 %v240
    %v262 = vpop.f32.mrf.mxu0
    %v263 = vadd.f32 0.0, %v262
    %264 = vdwg.mxu0
    %265 = vmatpush.msra.mxu0 0.0
    %266 = vmatpush.msra.mxu0 0.0
    %267 = vmatpush.msra.mxu0 0.0
    %268 = vmatpush.msra.mxu0 0.0
    %269 = vmatpush.msra.mxu0 0.0
    %270 = vmatpush.msra.mxu0 0.0
    %271 = vmatpush.msra.mxu0 0.0
    %272 = vmatpush.msra.mxu0 0.0
    %273 = vmatpush.msra.mxu0 0.0
    %274 = vmatpush.msra.mxu0 0.0
    %275 = vmatpush.msra.mxu0 0.0
    %276 = vmatpush.msra.mxu0 0.0
    %277 = vmatpush.msra.mxu0 0.0
    %278 = vmatpush.msra.mxu0 0.0
    %279 = vmatpush.msra.mxu0 %v235
    %280 = vmatpush.msra.mxu0 %v233
    %281 = vmatmul.f32.gmra.mxu0 %v237
    %v282 = vpop.f32.mrf.mxu0
    %v283 = vadd.f32 0.0, %v282
    %284 = vmatmul.f32.gmra.mxu0 %v240
    %v285 = vpop.f32.mrf.mxu0
    %v286 = vadd.f32 0.0, %v285
    %287 = vdwg.mxu0
    %v288 = vld [vmem:[#allocation11] ss:$4 sm:$0x3]
    %v290 = vperm.slane %v288, 0
    %v291 = vperm.slane %v288, 1
    %v294 = vmul.f32 %v260, %v290
    %v295 = vmul.f32 %v283, %v291
    %v296 = vmul.f32 %v263, %v290
    %v297 = vmul.f32 %v286, %v291
    %s298 = scalar_lea.vmem [#allocation11], 1
    %v299 = vld [vmem:[%s298] ss:$4 sm:$0x3]
    %v301 = vperm.slane %v299, 0
    %v302 = vperm.slane %v299, 1
    %v305 = vadd.f32 %v294, %v301
    %v306 = vadd.f32 %v295, %v302
    %v307 = vadd.f32 %v296, %v301
    %v308 = vadd.f32 %v297, %v302
    %v309 = vmax.f32 %v305, 0.0
    %v310 = vmax.f32 %v306, 0.0
    %v311 = vmax.f32 %v307, 0.0
    %v312 = vmax.f32 %v308, 0.0
    %v313 = vmul.f32 %v309, %v228
    %v314 = vmul.f32 %v310, %v229
    %v315 = vmul.f32 %v311, %v230
    %v316 = vmul.f32 %v312, %v231
    %319 = vrot.lane.b32.xlu0 %v313, 96
    %v320 = vpop.permute.xlu0 %319
    %321 = vrot.lane.b32.xlu0 %v315, 96
    %v322 = vpop.permute.xlu0 %321
    %v325 = vmax.f32 %v313, %v320
    %v326 = vmax.f32 %v315, %v322
    %327 = vrot.lane.b32.xlu0 %v313, 64
    %v328 = vpop.permute.xlu0 %327
    %329 = vrot.lane.b32.xlu0 %v315, 64
    %v330 = vpop.permute.xlu0 %329
    %v333 = vmax.f32 %v325, %v328
    %v334 = vmax.f32 %v326, %v330
    %335 = vrot.lane.b32.xlu0 %v313, 32
    %v336 = vpop.permute.xlu0 %335
    %337 = vrot.lane.b32.xlu0 %v315, 32
    %v338 = vpop.permute.xlu0 %337
    %v341 = vmax.f32 %v333, %v336
    %v342 = vmax.f32 %v334, %v338
    %v343 = vmax.f32 %v341, %v314
    %v344 = vmax.f32 %v342, %v316
    %347 = vrot.lane.b32.xlu0 %v314, 96
    %v348 = vpop.permute.xlu0 %347
    %349 = vrot.lane.b32.xlu0 %v316, 96
    %v350 = vpop.permute.xlu0 %349
    %v353 = vmax.f32 %v343, %v348
    %v354 = vmax.f32 %v344, %v350
    %355 = vrot.lane.b32.xlu0 %v314, 64
    %v356 = vpop.permute.xlu0 %355
    %357 = vrot.lane.b32.xlu0 %v316, 64
    %v358 = vpop.permute.xlu0 %357
    %v361 = vmax.f32 %v353, %v356
    %v362 = vmax.f32 %v354, %v358
    %363 = vrot.lane.b32.xlu0 %v314, 32
    %v364 = vpop.permute.xlu0 %363
    %365 = vrot.lane.b32.xlu0 %v316, 32
    %v366 = vpop.permute.xlu0 %365
    %v369 = vmax.f32 %v361, %v364
    %v370 = vmax.f32 %v362, %v366
    %v371 = vpack.c.bf16 %v315, %v313
    %v372 = vpack.c.bf16 %v316, %v314
    %v373 = vld [vmem:[#allocation8] sm:$0xff]
    %v374 = vld [vmem:[#allocation8 + $0x8] sm:$0xff]
    %v375 = vld [vmem:[#allocation8 + $0x10] sm:$0xff]
    %v376 = vld [vmem:[#allocation8 + $0x18] sm:$0xff]
    %v377 = vld [vmem:[#allocation8 + $0x20] sm:$0xff]
    %v378 = vld [vmem:[#allocation8 + $0x28] sm:$0xff]
    %v379 = vld [vmem:[#allocation8 + $0x30] sm:$0xff]
    %v380 = vld [vmem:[#allocation8 + $0x38] sm:$0xff]
    %v381 = vld [vmem:[#allocation8 + $0x40] sm:$0xff]
    %v382 = vld [vmem:[#allocation8 + $0x48] sm:$0xff]
    %v383 = vld [vmem:[#allocation8 + $0x50] sm:$0xff]
    %v384 = vld [vmem:[#allocation8 + $0x58] sm:$0xff]
    %v385 = vld [vmem:[#allocation8 + $0x60] sm:$0xff]
    %v386 = vld [vmem:[#allocation8 + $0x68] sm:$0xff]
    %v387 = vld [vmem:[#allocation8 + $0x70] sm:$0xff]
    %v388 = vld [vmem:[#allocation8 + $0x78] sm:$0xff]
    %v389 = vld [vmem:[#allocation8 + $0x80] sm:$0xff]
    %v390 = vld [vmem:[#allocation8 + $0x88] sm:$0xff]
    %v391 = vld [vmem:[#allocation8 + $0x90] sm:$0xff]
    %v392 = vld [vmem:[#allocation8 + $0x98] sm:$0xff]
    %v393 = vld [vmem:[#allocation8 + $0xa0] sm:$0xff]
    %v394 = vld [vmem:[#allocation8 + $0xa8] sm:$0xff]
    %v395 = vld [vmem:[#allocation8 + $0xb0] sm:$0xff]
    %v396 = vld [vmem:[#allocation8 + $0xb8] sm:$0xff]
    %v397 = vld [vmem:[#allocation8 + $0xc0] sm:$0xff]
    %v398 = vld [vmem:[#allocation8 + $0xc8] sm:$0xff]
    %v399 = vld [vmem:[#allocation8 + $0xd0] sm:$0xff]
    %v400 = vld [vmem:[#allocation8 + $0xd8] sm:$0xff]
    %v401 = vld [vmem:[#allocation8 + $0xe0] sm:$0xff]
    %v402 = vld [vmem:[#allocation8 + $0xe8] sm:$0xff]
    %v403 = vld [vmem:[#allocation8 + $0xf0] sm:$0xff]
    %v404 = vld [vmem:[#allocation8 + $0xf8] sm:$0xff]
    %v405 = vpack.c.bf16 %v370, %v369
    %v406 = vld [vmem:[#allocation10] sm:$0xff]
    %v407 = vld [vmem:[#allocation10 + $0x8] sm:$0xff]
    %v408 = vld [vmem:[#allocation10 + $0x10] sm:$0xff]
    %v409 = vld [vmem:[#allocation10 + $0x18] sm:$0xff]
    %v414 = vunpack.c.l.b16 %v406
    %v415 = vunpack.c.h.b16 %v406
    %v416 = vunpack.c.l.b16 %v407
    %v417 = vunpack.c.h.b16 %v407
    %v418 = vunpack.c.l.b16 %v408
    %v419 = vunpack.c.h.b16 %v408
    %v420 = vunpack.c.l.b16 %v409
    %v421 = vunpack.c.h.b16 %v409
    %v422 = vpack.c.b16 %v416, %v414
    %v423 = vpack.c.b16 %v417, %v415
    %v424 = vpack.c.b16 %v420, %v418
    %v425 = vpack.c.b16 %v421, %v419
    %vm430 = vcmask 261120
    %v432 = vsel %vm430, %v405, 0
    %434 = vmatpush.bf16.msra.mxu0 0
    %435 = vmatpush.bf16.msra.mxu0 0
    %436 = vmatpush.bf16.msra.mxu0 0
    %437 = vmatpush.bf16.msra.mxu0 0
    %438 = vmatpush.bf16.msra.mxu0 0
    %439 = vmatpush.bf16.msra.mxu0 0
    %440 = vmatpush.bf16.msra.mxu0 %v424
    %441 = vmatpush.bf16.msra.mxu0 %v422
    %442 = vmatmul.bf16.gmra.mxu0 %v432
    %v443 = vpop.f32.mrf.mxu0
    %v444 = vadd.f32 0.0, %v443
    %v445 = vpop.f32.mrf.mxu0
    %v446 = vadd.f32 0.0, %v445
    %447 = vdwg.mxu0
    %448 = vmatpush.bf16.msra.mxu0 0
    %449 = vmatpush.bf16.msra.mxu0 0
    %450 = vmatpush.bf16.msra.mxu0 0
    %451 = vmatpush.bf16.msra.mxu0 0
    %452 = vmatpush.bf16.msra.mxu0 0
    %453 = vmatpush.bf16.msra.mxu0 0
    %454 = vmatpush.bf16.msra.mxu0 %v425
    %455 = vmatpush.bf16.msra.mxu0 %v423
    %456 = vmatmul.bf16.gmra.mxu0 %v432
    %v457 = vpop.f32.mrf.mxu0
    %v458 = vadd.f32 0.0, %v457
    %v459 = vpop.f32.mrf.mxu0
    %v460 = vadd.f32 0.0, %v459
    %461 = vdwg.mxu0
    %v494 = vunpack.c.l.b16 %v373
    %v495 = vunpack.c.h.b16 %v373
    %v496 = vunpack.c.l.b16 %v374
    %v497 = vunpack.c.h.b16 %v374
    %v498 = vunpack.c.l.b16 %v375
    %v499 = vunpack.c.h.b16 %v375
    %v500 = vunpack.c.l.b16 %v376
    %v501 = vunpack.c.h.b16 %v376
    %v502 = vunpack.c.l.b16 %v377
    %v503 = vunpack.c.h.b16 %v377
    %v504 = vunpack.c.l.b16 %v378
    %v505 = vunpack.c.h.b16 %v378
    %v506 = vunpack.c.l.b16 %v379
    %v507 = vunpack.c.h.b16 %v379
    %v508 = vunpack.c.l.b16 %v380
    %v509 = vunpack.c.h.b16 %v380
    %v510 = vunpack.c.l.b16 %v381
    %v511 = vunpack.c.h.b16 %v381
    %v512 = vunpack.c.l.b16 %v382
    %v513 = vunpack.c.h.b16 %v382
    %v514 = vunpack.c.l.b16 %v383
    %v515 = vunpack.c.h.b16 %v383
    %v516 = vunpack.c.l.b16 %v384
    %v517 = vunpack.c.h.b16 %v384
    %v518 = vunpack.c.l.b16 %v385
    %v519 = vunpack.c.h.b16 %v385
    %v520 = vunpack.c.l.b16 %v386
    %v521 = vunpack.c.h.b16 %v386
    %v522 = vunpack.c.l.b16 %v387
    %v523 = vunpack.c.h.b16 %v387
    %v524 = vunpack.c.l.b16 %v388
    %v525 = vunpack.c.h.b16 %v388
    %v526 = vunpack.c.l.b16 %v389
    %v527 = vunpack.c.h.b16 %v389
    %v528 = vunpack.c.l.b16 %v390
    %v529 = vunpack.c.h.b16 %v390
    %v530 = vunpack.c.l.b16 %v391
    %v531 = vunpack.c.h.b16 %v391
    %v532 = vunpack.c.l.b16 %v392
    %v533 = vunpack.c.h.b16 %v392
    %v534 = vunpack.c.l.b16 %v393
    %v535 = vunpack.c.h.b16 %v393
    %v536 = vunpack.c.l.b16 %v394
    %v537 = vunpack.c.h.b16 %v394
    %v538 = vunpack.c.l.b16 %v395
    %v539 = vunpack.c.h.b16 %v395
    %v540 = vunpack.c.l.b16 %v396
    %v541 = vunpack.c.h.b16 %v396
    %v542 = vunpack.c.l.b16 %v397
    %v543 = vunpack.c.h.b16 %v397
    %v544 = vunpack.c.l.b16 %v398
    %v545 = vunpack.c.h.b16 %v398
    %v546 = vunpack.c.l.b16 %v399
    %v547 = vunpack.c.h.b16 %v399
    %v548 = vunpack.c.l.b16 %v400
    %v549 = vunpack.c.h.b16 %v400
    %v550 = vunpack.c.l.b16 %v401
    %v551 = vunpack.c.h.b16 %v401
    %v552 = vunpack.c.l.b16 %v402
    %v553 = vunpack.c.h.b16 %v402
    %v554 = vunpack.c.l.b16 %v403
    %v555 = vunpack.c.h.b16 %v403
    %v556 = vunpack.c.l.b16 %v404
    %v557 = vunpack.c.h.b16 %v404
    %v558 = vpack.c.b16 %v496, %v494
    %v559 = vpack.c.b16 %v497, %v495
    %v560 = vpack.c.b16 %v500, %v498
    %v561 = vpack.c.b16 %v501, %v499
    %v562 = vpack.c.b16 %v504, %v502
    %v563 = vpack.c.b16 %v505, %v503
    %v564 = vpack.c.b16 %v508, %v506
    %v565 = vpack.c.b16 %v509, %v507
    %v566 = vpack.c.b16 %v512, %v510
    %v567 = vpack.c.b16 %v513, %v511
    %v568 = vpack.c.b16 %v516, %v514
    %v569 = vpack.c.b16 %v517, %v515
    %v570 = vpack.c.b16 %v520, %v518
    %v571 = vpack.c.b16 %v521, %v519
    %v572 = vpack.c.b16 %v524, %v522
    %v573 = vpack.c.b16 %v525, %v523
    %v574 = vpack.c.b16 %v528, %v526
    %v575 = vpack.c.b16 %v529, %v527
    %v576 = vpack.c.b16 %v532, %v530
    %v577 = vpack.c.b16 %v533, %v531
    %v578 = vpack.c.b16 %v536, %v534
    %v579 = vpack.c.b16 %v537, %v535
    %v580 = vpack.c.b16 %v540, %v538
    %v581 = vpack.c.b16 %v541, %v539
    %v582 = vpack.c.b16 %v544, %v542
    %v583 = vpack.c.b16 %v545, %v543
    %v584 = vpack.c.b16 %v548, %v546
    %v585 = vpack.c.b16 %v549, %v547
    %v586 = vpack.c.b16 %v552, %v550
    %v587 = vpack.c.b16 %v553, %v551
    %v588 = vpack.c.b16 %v556, %v554
    %v589 = vpack.c.b16 %v557, %v555
    %622 = vmatpush.bf16.msra.mxu0 %v572
    %623 = vmatpush.bf16.msra.mxu0 %v570
    %624 = vmatpush.bf16.msra.mxu0 %v568
    %625 = vmatpush.bf16.msra.mxu0 %v566
    %626 = vmatpush.bf16.msra.mxu0 %v564
    %627 = vmatpush.bf16.msra.mxu0 %v562
    %628 = vmatpush.bf16.msra.mxu0 %v560
    %629 = vmatpush.bf16.msra.mxu0 %v558
    %630 = vmatmul.bf16.gmra.mxu0 %v371
    %v631 = vpop.f32.mrf.mxu0
    %v632 = vadd.f32 %v444, %v631
    %v633 = vpop.f32.mrf.mxu0
    %v634 = vadd.f32 %v446, %v633
    %635 = vdwg.mxu0
    %636 = vmatpush.bf16.msra.mxu0 %v588
    %637 = vmatpush.bf16.msra.mxu0 %v586
    %638 = vmatpush.bf16.msra.mxu0 %v584
    %639 = vmatpush.bf16.msra.mxu0 %v582
    %640 = vmatpush.bf16.msra.mxu0 %v580
    %641 = vmatpush.bf16.msra.mxu0 %v578
    %642 = vmatpush.bf16.msra.mxu0 %v576
    %643 = vmatpush.bf16.msra.mxu0 %v574
    %644 = vmatmul.bf16.gmra.mxu0 %v372
    %v645 = vpop.f32.mrf.mxu0
    %v646 = vadd.f32 %v632, %v645
    %v647 = vpop.f32.mrf.mxu0
    %v648 = vadd.f32 %v634, %v647
    %649 = vdwg.mxu0
    %650 = vmatpush.bf16.msra.mxu0 %v573
    %651 = vmatpush.bf16.msra.mxu0 %v571
    %652 = vmatpush.bf16.msra.mxu0 %v569
    %653 = vmatpush.bf16.msra.mxu0 %v567
    %654 = vmatpush.bf16.msra.mxu0 %v565
    %655 = vmatpush.bf16.msra.mxu0 %v563
    %656 = vmatpush.bf16.msra.mxu0 %v561
    %657 = vmatpush.bf16.msra.mxu0 %v559
    %658 = vmatmul.bf16.gmra.mxu0 %v371
    %v659 = vpop.f32.mrf.mxu0
    %v660 = vadd.f32 %v458, %v659
    %v661 = vpop.f32.mrf.mxu0
    %v662 = vadd.f32 %v460, %v661
    %663 = vdwg.mxu0
    %664 = vmatpush.bf16.msra.mxu0 %v589
    %665 = vmatpush.bf16.msra.mxu0 %v587
    %666 = vmatpush.bf16.msra.mxu0 %v585
    %667 = vmatpush.bf16.msra.mxu0 %v583
    %668 = vmatpush.bf16.msra.mxu0 %v581
    %669 = vmatpush.bf16.msra.mxu0 %v579
    %670 = vmatpush.bf16.msra.mxu0 %v577
    %671 = vmatpush.bf16.msra.mxu0 %v575
    %672 = vmatmul.bf16.gmra.mxu0 %v372
    %v673 = vpop.f32.mrf.mxu0
    %v674 = vadd.f32 %v660, %v673
    %v675 = vpop.f32.mrf.mxu0
    %v676 = vadd.f32 %v662, %v675
    %677 = vdwg.mxu0
    %s678 = scalar_lea.vmem [#allocation11], 2
    %v679 = vld [vmem:[%s678] ss:$4 sm:$0x3]
    %v681 = vperm.slane %v679, 0
    %v682 = vperm.slane %v679, 1
    %v685 = vmul.f32 %v646, %v681
    %v686 = vmul.f32 %v674, %v682
    %v687 = vmul.f32 %v648, %v681
    %v688 = vmul.f32 %v676, %v682
    %s689 = scalar_lea.vmem [#allocation11], 3
    %v690 = vld [vmem:[%s689] ss:$4 sm:$0x3]
    %v692 = vperm.slane %v690, 0
    %v693 = vperm.slane %v690, 1
    %v696 = vadd.f32 %v685, %v692
    %v697 = vadd.f32 %v686, %v693
    %v698 = vadd.f32 %v687, %v692
    %v699 = vadd.f32 %v688, %v693
    %v700 = vmax.f32 %v696, 0.0
    %v701 = vmax.f32 %v697, 0.0
    %v702 = vmax.f32 %v698, 0.0
    %v703 = vmax.f32 %v699, 0.0
    %v704 = vmul.f32 %v700, %v228
    %v705 = vmul.f32 %v701, %v229
    %v706 = vmul.f32 %v702, %v230
    %v707 = vmul.f32 %v703, %v231
    %710 = vrot.lane.b32.xlu0 %v704, 96
    %v711 = vpop.permute.xlu0 %710
    %712 = vrot.lane.b32.xlu0 %v706, 96
    %v713 = vpop.permute.xlu0 %712
    %v716 = vmax.f32 %v704, %v711
    %v717 = vmax.f32 %v706, %v713
    %718 = vrot.lane.b32.xlu0 %v704, 64
    %v719 = vpop.permute.xlu0 %718
    %720 = vrot.lane.b32.xlu0 %v706, 64
    %v721 = vpop.permute.xlu0 %720
    %v724 = vmax.f32 %v716, %v719
    %v725 = vmax.f32 %v717, %v721
    %726 = vrot.lane.b32.xlu0 %v704, 32
    %v727 = vpop.permute.xlu0 %726
    %728 = vrot.lane.b32.xlu0 %v706, 32
    %v729 = vpop.permute.xlu0 %728
    %v732 = vmax.f32 %v724, %v727
    %v733 = vmax.f32 %v725, %v729
    %v734 = vmax.f32 %v732, %v705
    %v735 = vmax.f32 %v733, %v707
    %738 = vrot.lane.b32.xlu0 %v705, 96
    %v739 = vpop.permute.xlu0 %738
    %740 = vrot.lane.b32.xlu0 %v707, 96
    %v741 = vpop.permute.xlu0 %740
    %v744 = vmax.f32 %v734, %v739
    %v745 = vmax.f32 %v735, %v741
    %746 = vrot.lane.b32.xlu0 %v705, 64
    %v747 = vpop.permute.xlu0 %746
    %748 = vrot.lane.b32.xlu0 %v707, 64
    %v749 = vpop.permute.xlu0 %748
    %v752 = vmax.f32 %v744, %v747
    %v753 = vmax.f32 %v745, %v749
    %754 = vrot.lane.b32.xlu0 %v705, 32
    %v755 = vpop.permute.xlu0 %754
    %756 = vrot.lane.b32.xlu0 %v707, 32
    %v757 = vpop.permute.xlu0 %756
    %v760 = vmax.f32 %v752, %v755
    %v761 = vmax.f32 %v753, %v757
    %v762 = vpack.c.bf16 %v761, %v760
    %v763 = vld [vmem:[#allocation13] sm:$0xf]
    %v764 = vld [vmem:[#allocation13 + $0x4] sm:$0xf]
    %v765 = vld [vmem:[#allocation13 + $0x8] sm:$0xf]
    %v766 = vld [vmem:[#allocation13 + $0xc] sm:$0xf]
    %v767 = vld [vmem:[%s8] sm:$0x1]
    %v768 = vperm.slane %v767, 0
    %v773 = vunpack.c.l.b16 %v763
    %v774 = vunpack.c.l.b16 %v764
    %v775 = vunpack.c.l.b16 %v765
    %v776 = vunpack.c.l.b16 %v766
    %v777 = vpack.c.b16 %v774, %v773
    %v778 = vpack.c.b16 %v776, %v775
    %v782 = vsel %vm430, %v762, 0
    %784 = vmatpush.bf16.msra.mxu0 0
    %785 = vmatpush.bf16.msra.mxu0 0
    %786 = vmatpush.bf16.msra.mxu0 0
    %787 = vmatpush.bf16.msra.mxu0 0
    %788 = vmatpush.bf16.msra.mxu0 0
    %789 = vmatpush.bf16.msra.mxu0 0
    %790 = vmatpush.bf16.msra.mxu0 %v778
    %791 = vmatpush.bf16.msra.mxu0 %v777
    %792 = vmatmul.bf16.gmra.mxu0 %v782
    %v793 = vpop.f32.mrf.mxu0
    %v794 = vadd.f32 %v768, %v793
    %v795 = vpop.f32.mrf.mxu0
    %v796 = vadd.f32 %v768, %v795
    %797 = vdwg.mxu0
    %v798 = vmax.f32 %v794, 0.0
    %v799 = vmax.f32 %v796, 0.0
    %v800 = vpack.c.bf16 %v799, %v798
    %v801 = vld [vmem:[#allocation14] sm:$0xf]
    %v802 = vld [vmem:[#allocation14 + $0x4] sm:$0xf]
    %v803 = vld [vmem:[#allocation14 + $0x8] sm:$0xf]
    %v804 = vld [vmem:[#allocation14 + $0xc] sm:$0xf]
    %v805 = vld [vmem:[%s8 + $0x1] sm:$0x1]
    %v806 = vperm.slane %v805, 0
    %v811 = vunpack.c.l.b16 %v801
    %v812 = vunpack.c.l.b16 %v802
    %v813 = vunpack.c.l.b16 %v803
    %v814 = vunpack.c.l.b16 %v804
    %v815 = vpack.c.b16 %v812, %v811
    %v816 = vpack.c.b16 %v814, %v813
    %v820 = vsel %vm430, %v800, 0
    %822 = vmatpush.bf16.msra.mxu0 0
    %823 = vmatpush.bf16.msra.mxu0 0
    %824 = vmatpush.bf16.msra.mxu0 0
    %825 = vmatpush.bf16.msra.mxu0 0
    %826 = vmatpush.bf16.msra.mxu0 0
    %827 = vmatpush.bf16.msra.mxu0 0
    %828 = vmatpush.bf16.msra.mxu0 %v816
    %829 = vmatpush.bf16.msra.mxu0 %v815
    %830 = vmatmul.bf16.gmra.mxu0 %v820
    %v831 = vpop.f32.mrf.mxu0
    %v832 = vadd.f32 %v806, %v831
    %v833 = vpop.f32.mrf.mxu0
    %v834 = vadd.f32 %v806, %v833
    %835 = vdwg.mxu0
    %v836 = vmax.f32 %v228, %v229
    %837 = vmax.xlane.f32.xlu0 %v836
    %v838 = vpop.xlane.xlu0 %837
    %v839 = vmax.f32 %v230, %v231
    %840 = vmax.xlane.f32.xlu0 %v839
    %v841 = vpop.xlane.xlu0 %840
    %v842 = vmul.f32 %v832, %v838
    %v843 = vmul.f32 %v834, %v841
    %844 = vst.msk [vmem:[#allocation16] sm:$0xff] %vm430, %v842
    %845 = vst.msk [vmem:[#allocation16 + $0x8] sm:$0xff] %vm430, %v843
    // Predicated region
    $region70: #{tpu_custom_call.1} parent=1 // pred_check
      _
    $region71: #{tpu_custom_call.1} parent=1 // pred_check_branch
      %847 = sbr.rel (0) target = $region73
    $region72: #{tpu_custom_call.1} parent=1 // pred_region
      %849 = vsyncadd [#allocation4], 0
      %s850 = sshll.u32 [#allocation16], 4
      %s851 = int_to_ptr.vmem [resolvable:$true] %s850
      %s852 = sshll.u32 %s9, 4
      %s853 = int_to_ptr.hbm [resolvable:$true] %s852
      %858 = dma.vmem_to_hbm [thread:$0]  %s851, 256, %s853, [#allocation4], 128, 128, 8
    $region73: #{tpu_custom_call.1} parent=1 // pred_fallthru
      _
    // Predicated region
    $region74: #{tpu_custom_call.1} parent=1 // pred_check
      _
    $region75: #{tpu_custom_call.1} parent=1 // pred_check_branch
      %860 = sbr.rel (0) target = $region77
    $region76: #{tpu_custom_call.1} parent=1 // pred_region
      %862 = dma.done [#allocation4], 256
    $region77: #{tpu_custom_call.1} parent=1 // pred_fallthru
      _
    %863 = vsyncpa [#allocation3], 1
    %864 = vsyncpa [#allocation6], 1
    %865 = vsyncpa [#allocation9], 1
    %866 = vsyncpa [#allocation12], 1
    %867 = vsyncpa [#allocation15], 1
    %868 = vsyncpa [#allocation4], 1

</llo_original>
